<compile_context>
chip_gen: v5e
topology: v5e:2x2
jax: 0.10.0
libtpu: 0.0.40
codegen_flags: <defaults>
</compile_context>

<pallas_src>
import jax
import jax.numpy as jnp
from jax import lax
from jax.experimental import pallas as pl
from jax.experimental.pallas import tpu as pltpu


# ---------------------------------------------------------------------------
# Pallas kernel (entire forward pass)
# ---------------------------------------------------------------------------
def _bf16(v):
    return v.astype(jnp.bfloat16)


def _mm(a, w_bf16):
    """bf16 MXU matmul with f32 accumulation (weights pre-cast in wrapper)."""
    return jnp.dot(_bf16(a), w_bf16, preferred_element_type=jnp.float32)


def _gather(g_nt, v):
    """Row gather via transposed contraction: out[e, :] = v[idx[e], :].

    g_nt is the (N, E) one-hot (g_nt[n, e] = 1 iff idx[e] == n); contract the
    node axis (dim 0 of both operands) on the MXU.
    """
    return lax.dot_general(g_nt, _bf16(v),
                           (((0,), (0,)), ((), ())),
                           preferred_element_type=jnp.float32)


def _fused_gnn_kernel(src_ref, dst_ref, invdeg_ref, x_ref, e_ref, *refs):
    """Whole GNN forward.  refs = per-layer conv/edge weights + post weights + out."""
    o_ref = refs[-1]
    wrefs = refs[:-1]

    n_nodes = x_ref.shape[0]
    n_edges = e_ref.shape[0]

    # Two (N, E) bf16 one-hot operators built from lane-major int32 indices.
    # (0/1 is exact in bf16; no (E, N)/(N, E) HBM traffic, no identity mats.)
    node_iota = lax.broadcasted_iota(jnp.int32, (n_nodes, n_edges), 0)
    g_src = jnp.where(src_ref[...] == node_iota, 1.0, 0.0).astype(jnp.bfloat16)
    g_dst = jnp.where(dst_ref[...] == node_iota, 1.0, 0.0).astype(jnp.bfloat16)
    inv_deg = invdeg_ref[...]                              # (N, 1) f32, wrapper

    x = x_ref[...]                                         # (N, Dx) f32
    e = e_ref[...]                                         # (E, De) f32

    p = 0
    for layer in range(3):
        wm_x, wm_e, bm, wa, ba = [r[...] for r in wrefs[p:p + 5]]
        p += 5

        # message_lin: m = relu([x[src], e] @ Wm + bm)  (project-then-gather)
        px = _mm(x, wm_x)                                  # (N, Do)
        msg = jnp.maximum(_gather(g_src, px) + _mm(e, wm_e) + bm, 0.0)  # (E, Do)

        # mean aggregation at dst (plain dot on the (N,E) operator), then
        # agg_lin (single fused matmul on concat([agg, x])) + relu + L2 norm.
        agg = (jnp.dot(g_dst, _bf16(msg), preferred_element_type=jnp.float32)
               * inv_deg)                                  # (N, Do)
        h = jnp.maximum(
            _mm(jnp.concatenate([agg, x], axis=-1), wa) + ba, 0.0)      # (N, Do)
        ss = jnp.sum(h * h, axis=-1, keepdims=True)
        x = h * lax.rsqrt(jnp.maximum(ss, 1e-24))          # F.normalize

        # edge update: e = relu([x[src], x[dst]] @ We + be)
        # (single projection x @ [W_i | W_j], then gather the two halves).
        # Layer 3's edge update never feeds the returned x -> skipped.
        if layer < 2:
            w_ij, b_e = [r[...] for r in wrefs[p:p + 2]]
            p += 2
            deo = w_ij.shape[1] // 2
            pij = _mm(x, w_ij)                             # (N, 2*Deo)
            e = jnp.maximum(_gather(g_src, pij[:, :deo])
                            + _gather(g_dst, pij[:, deo:]) + b_e, 0.0)  # (E, Deo)

    # node_post_mlp: Linear -> ReLU -> (Dropout = identity) -> Linear
    w1, b1, w2, b2 = [r[...] for r in wrefs[p:p + 4]]
    h = jnp.maximum(_mm(x, w1) + b1, 0.0)
    # TODO(synk): training-mode dropout (pltpu.prng_random_bits mask) not implemented.
    o_ref[...] = _mm(h, w2) + b2                           # lane-dense (N, 128) store


# ---------------------------------------------------------------------------
# Wrapper: single pallas_call for the whole forward
# ---------------------------------------------------------------------------
def gnn_forward(params, x, edge_value, edge_index):
    n_nodes = x.shape[0]
    src = edge_index[0].astype(jnp.int32)   # message source / x_i
    dst = edge_index[1].astype(jnp.int32)   # aggregation target / x_j
    src_row = src[None, :]                  # (1, E) lane-major indices
    dst_row = dst[None, :]                  # (1, E)

    # scatter-mean normalization, computed once outside the kernel
    deg = jnp.zeros((n_nodes,), jnp.float32).at[dst].add(1.0)
    inv_deg = (1.0 / jnp.maximum(deg, 1.0))[:, None]       # (N, 1)

    bf = lambda w: w.astype(jnp.bfloat16)   # weights bf16 once; biases stay f32
    flat_w = []
    for layer in range(3):
        cp = params["convs"][layer]
        flat_w += [bf(cp["wm_x"]), bf(cp["wm_e"]), cp["bm"], bf(cp["wa"]), cp["ba"]]
        if layer < 2:                       # layer-3 edge update is dead work
            ep = params["edge_mlps"][layer]
            flat_w += [bf(ep["w_ij"]), ep["b"]]

    pp = params["post"]
    out_dim = pp["w2"].shape[1]
    out_pad = max(128, ((out_dim + 127) // 128) * 128)     # lane-dense store
    w2p = jnp.pad(pp["w2"], ((0, 0), (0, out_pad - out_dim)))
    b2p = jnp.pad(pp["b2"], ((0, 0), (0, out_pad - out_dim)))
    flat_w += [bf(pp["w1"]), pp["b1"], bf(w2p), b2p]

    vmem = pl.BlockSpec(memory_space=pltpu.MemorySpace.VMEM)
    out = pl.pallas_call(
        _fused_gnn_kernel,
        out_shape=jax.ShapeDtypeStruct((n_nodes, out_pad), jnp.float32),
        in_specs=[vmem] * (5 + len(flat_w)),
        out_specs=vmem,
        # Fits comfortably on every generation at these shapes; re-derive
        # (<= ~48-56 MiB on v7x, higher on v5e/v6e) before scaling graph size.
        compiler_params=pltpu.CompilerParams(vmem_limit_bytes=32 * 1024 * 1024),
    )(src_row, dst_row, inv_deg, x, edge_value, *flat_w)
    return out[:, :out_dim]


# ---------------------------------------------------------------------------
# Parameter init (matches the PyTorch module's layer dimensions)
# ---------------------------------------------------------------------------
def _linear(key, d_in, d_out):
    kw, kb = jax.random.split(key)
    lim = 1.0 / float(d_in) ** 0.5
    w = jax.random.uniform(kw, (d_in, d_out), jnp.float32, -lim, lim)
    b = jax.random.uniform(kb, (1, d_out), jnp.float32, -lim, lim)
    return w, b


def init_params(key, node_input_dim, edge_input_dim, node_dim, edge_dim,
                post_hidden):
    keys = iter(jax.random.split(key, 16))
    node_out = node_dim // 2
    edge_out = edge_dim // 2

    convs = []
    # (node_in, node_out, edge_in) per layer
    conv_dims = [(node_input_dim, node_dim, edge_input_dim),
                 (node_dim, node_dim, edge_dim),
                 (node_dim, node_out, edge_dim)]
    for d_in, d_out, d_e in conv_dims:
        wm, bm = _linear(next(keys), d_in + d_e, d_out)    # message_lin
        wa, ba = _linear(next(keys), d_out + d_in, d_out)  # agg_lin (kept stacked)
        convs.append(dict(wm_x=wm[:d_in], wm_e=wm[d_in:], bm=bm, wa=wa, ba=ba))

    edge_mlps = []
    # edge update MLP input = cat(x_i, x_j); store as [W_i | W_j] for a single
    # project-then-gather matmul.
    emlp_dims = [(node_dim, edge_dim), (node_dim, edge_dim),
                 (node_out, edge_out)]
    for d_node, d_out in emlp_dims:
        w, b = _linear(next(keys), 2 * d_node, d_out)
        edge_mlps.append(dict(
            w_ij=jnp.concatenate([w[:d_node], w[d_node:]], axis=1), b=b))

    w1, b1 = _linear(next(keys), node_out, post_hidden)
    w2, b2 = _linear(next(keys), post_hidden, post_hidden // 2)
    post = dict(w1=w1, b1=b1, w2=w2, b2=b2)
    return dict(convs=convs, edge_mlps=edge_mlps, post=post)


# ---------------------------------------------------------------------------
if __name__ == "__main__":
    NODE_INPUT_DIM = 16
    EDGE_INPUT_DIM = 8
    NODE_DIM = 32
    EDGE_DIM = 16
    POST_HIDDEN = 32
    N_NODES = 12
    N_EDGES = 24

    root = jax.random.PRNGKey(0)
    k_param, k_x, k_e, k_idx = jax.random.split(root, 4)

    params = init_params(k_param, NODE_INPUT_DIM, EDGE_INPUT_DIM,
                         NODE_DIM, EDGE_DIM, POST_HIDDEN)

    x = jax.random.normal(k_x, (N_NODES, NODE_INPUT_DIM), jnp.float32)
    edge_value = jax.random.normal(k_e, (N_EDGES, EDGE_INPUT_DIM), jnp.float32)
    edge_index = jax.random.randint(k_idx, (2, N_EDGES), 0, N_NODES,
                                    dtype=jnp.int32)

    out = jax.jit(gnn_forward)(params, x, edge_value, edge_index)
    out = jax.block_until_ready(out)

    assert out.shape == (N_NODES, POST_HIDDEN // 2), out.shape
    assert jnp.all(jnp.isfinite(out))
    print("KERNEL_OK")
</pallas_src>

<mosaic_0001>
module attributes {stable_mosaic.version = 11 : i64} {
  func.func @_fused_gnn_kernel(%arg0: memref<1x24xi32, #tpu.memory_space<vmem>>, %arg1: memref<1x24xi32, #tpu.memory_space<vmem>>, %arg2: memref<12x1xf32, #tpu.memory_space<vmem>>, %arg3: memref<12x16xf32, #tpu.memory_space<vmem>>, %arg4: memref<24x8xf32, #tpu.memory_space<vmem>>, %arg5: memref<16x32xbf16, #tpu.memory_space<vmem>>, %arg6: memref<8x32xbf16, #tpu.memory_space<vmem>>, %arg7: memref<1x32xf32, #tpu.memory_space<vmem>>, %arg8: memref<48x32xbf16, #tpu.memory_space<vmem>>, %arg9: memref<1x32xf32, #tpu.memory_space<vmem>>, %arg10: memref<32x32xbf16, #tpu.memory_space<vmem>>, %arg11: memref<1x16xf32, #tpu.memory_space<vmem>>, %arg12: memref<32x32xbf16, #tpu.memory_space<vmem>>, %arg13: memref<16x32xbf16, #tpu.memory_space<vmem>>, %arg14: memref<1x32xf32, #tpu.memory_space<vmem>>, %arg15: memref<64x32xbf16, #tpu.memory_space<vmem>>, %arg16: memref<1x32xf32, #tpu.memory_space<vmem>>, %arg17: memref<32x32xbf16, #tpu.memory_space<vmem>>, %arg18: memref<1x16xf32, #tpu.memory_space<vmem>>, %arg19: memref<32x16xbf16, #tpu.memory_space<vmem>>, %arg20: memref<16x16xbf16, #tpu.memory_space<vmem>>, %arg21: memref<1x16xf32, #tpu.memory_space<vmem>>, %arg22: memref<48x16xbf16, #tpu.memory_space<vmem>>, %arg23: memref<1x16xf32, #tpu.memory_space<vmem>>, %arg24: memref<16x32xbf16, #tpu.memory_space<vmem>>, %arg25: memref<1x32xf32, #tpu.memory_space<vmem>>, %arg26: memref<32x128xbf16, #tpu.memory_space<vmem>>, %arg27: memref<1x128xf32, #tpu.memory_space<vmem>>, %arg28: memref<12x128xf32, #tpu.memory_space<vmem>>) attributes {dimension_semantics = [], scalar_prefetch = 0 : i64, scratch_operands = 0 : i64, tpu.core_type = #tpu.core_type<tc>} {
    %0 = tpu.iota {dimensions = array<i32: 0>} : vector<12x24xi32>
    %c0 = arith.constant 0 : index
    %c0_0 = arith.constant 0 : index
    %1 = vector.load %arg0[%c0, %c0_0] : memref<1x24xi32, #tpu.memory_space<vmem>>, vector<1x24xi32>
    %2 = vector.broadcast %1 : vector<1x24xi32> to vector<12x24xi32>
    %3 = arith.cmpi eq, %2, %0 : vector<12x24xi32>
    %cst = arith.constant 1.000000e+00 : f32
    %cst_1 = arith.constant 0.000000e+00 : f32
    %4 = vector.broadcast %cst : f32 to vector<12x24xf32>
    %5 = vector.broadcast %cst_1 : f32 to vector<12x24xf32>
    %6 = arith.select %3, %4, %5 : vector<12x24xi1>, vector<12x24xf32>
    %7 = arith.truncf %6 : vector<12x24xf32> to vector<12x24xbf16>
    %c0_2 = arith.constant 0 : index
    %c0_3 = arith.constant 0 : index
    %8 = vector.load %arg1[%c0_2, %c0_3] : memref<1x24xi32, #tpu.memory_space<vmem>>, vector<1x24xi32>
    %9 = vector.broadcast %8 : vector<1x24xi32> to vector<12x24xi32>
    %10 = arith.cmpi eq, %9, %0 : vector<12x24xi32>
    %cst_4 = arith.constant 1.000000e+00 : f32
    %cst_5 = arith.constant 0.000000e+00 : f32
    %11 = vector.broadcast %cst_4 : f32 to vector<12x24xf32>
    %12 = vector.broadcast %cst_5 : f32 to vector<12x24xf32>
    %13 = arith.select %10, %11, %12 : vector<12x24xi1>, vector<12x24xf32>
    %14 = arith.truncf %13 : vector<12x24xf32> to vector<12x24xbf16>
    %c0_6 = arith.constant 0 : index
    %c0_7 = arith.constant 0 : index
    %15 = vector.load %arg2[%c0_6, %c0_7] : memref<12x1xf32, #tpu.memory_space<vmem>>, vector<12x1xf32>
    %c0_8 = arith.constant 0 : index
    %c0_9 = arith.constant 0 : index
    %16 = vector.load %arg3[%c0_8, %c0_9] : memref<12x16xf32, #tpu.memory_space<vmem>>, vector<12x16xf32>
    %c0_10 = arith.constant 0 : index
    %c0_11 = arith.constant 0 : index
    %17 = vector.load %arg4[%c0_10, %c0_11] : memref<24x8xf32, #tpu.memory_space<vmem>>, vector<24x8xf32>
    %c0_12 = arith.constant 0 : index
    %c0_13 = arith.constant 0 : index
    %18 = vector.load %arg5[%c0_12, %c0_13] : memref<16x32xbf16, #tpu.memory_space<vmem>>, vector<16x32xbf16>
    %c0_14 = arith.constant 0 : index
    %c0_15 = arith.constant 0 : index
    %19 = vector.load %arg6[%c0_14, %c0_15] : memref<8x32xbf16, #tpu.memory_space<vmem>>, vector<8x32xbf16>
    %c0_16 = arith.constant 0 : index
    %c0_17 = arith.constant 0 : index
    %20 = vector.load %arg7[%c0_16, %c0_17] : memref<1x32xf32, #tpu.memory_space<vmem>>, vector<1x32xf32>
    %c0_18 = arith.constant 0 : index
    %c0_19 = arith.constant 0 : index
    %21 = vector.load %arg8[%c0_18, %c0_19] : memref<48x32xbf16, #tpu.memory_space<vmem>>, vector<48x32xbf16>
    %c0_20 = arith.constant 0 : index
    %c0_21 = arith.constant 0 : index
    %22 = vector.load %arg9[%c0_20, %c0_21] : memref<1x32xf32, #tpu.memory_space<vmem>>, vector<1x32xf32>
    %23 = arith.truncf %16 : vector<12x16xf32> to vector<12x16xbf16>
    %cst_22 = arith.constant dense<0.000000e+00> : vector<12x32xf32>
    %24 = tpu.matmul %23, %18, %cst_22 {dimension_numbers = #tpu.dot_dimension_numbers<[1], [0], [0], [1], [0, 0, 1, 1], [], []>} : vector<12x16xbf16>, vector<16x32xbf16>, vector<12x32xf32> -> vector<12x32xf32>
    %25 = arith.truncf %24 : vector<12x32xf32> to vector<12x32xbf16>
    %cst_23 = arith.constant dense<0.000000e+00> : vector<24x32xf32>
    %26 = tpu.matmul %7, %25, %cst_23 {dimension_numbers = #tpu.dot_dimension_numbers<[0], [0], [1], [1], [0, 1, 1, 1], [], []>} : vector<12x24xbf16>, vector<12x32xbf16>, vector<24x32xf32> -> vector<24x32xf32>
    %27 = arith.truncf %17 : vector<24x8xf32> to vector<24x8xbf16>
    %cst_24 = arith.constant dense<0.000000e+00> : vector<24x32xf32>
    %28 = tpu.matmul %27, %19, %cst_24 {dimension_numbers = #tpu.dot_dimension_numbers<[1], [0], [0], [1], [0, 0, 1, 1], [], []>} : vector<24x8xbf16>, vector<8x32xbf16>, vector<24x32xf32> -> vector<24x32xf32>
    %29 = arith.addf %26, %28 : vector<24x32xf32>
    %30 = vector.broadcast %20 : vector<1x32xf32> to vector<24x32xf32>
    %31 = arith.addf %29, %30 : vector<24x32xf32>
    %cst_25 = arith.constant 0.000000e+00 : f32
    %32 = vector.broadcast %cst_25 : f32 to vector<24x32xf32>
    %33 = arith.maximumf %31, %32 : vector<24x32xf32>
    %34 = arith.truncf %33 : vector<24x32xf32> to vector<24x32xbf16>
    %cst_26 = arith.constant dense<0.000000e+00> : vector<12x32xf32>
    %35 = tpu.matmul %14, %34, %cst_26 {dimension_numbers = #tpu.dot_dimension_numbers<[1], [0], [0], [1], [0, 0, 1, 1], [], []>} : vector<12x24xbf16>, vector<24x32xbf16>, vector<12x32xf32> -> vector<12x32xf32>
    %36 = vector.broadcast %15 : vector<12x1xf32> to vector<12x32xf32>
    %37 = arith.mulf %35, %36 : vector<12x32xf32>
    %38 = tpu.concatenate %37, %16 in 1 : vector<12x32xf32>, vector<12x16xf32> -> vector<12x48xf32>
    %39 = arith.truncf %38 : vector<12x48xf32> to vector<12x48xbf16>
    %cst_27 = arith.constant dense<0.000000e+00> : vector<12x32xf32>
    %40 = tpu.matmul %39, %21, %cst_27 {dimension_numbers = #tpu.dot_dimension_numbers<[1], [0], [0], [1], [0, 0, 1, 1], [], []>} : vector<12x48xbf16>, vector<48x32xbf16>, vector<12x32xf32> -> vector<12x32xf32>
    %41 = vector.broadcast %22 : vector<1x32xf32> to vector<12x32xf32>
    %42 = arith.addf %40, %41 : vector<12x32xf32>
    %cst_28 = arith.constant 0.000000e+00 : f32
    %43 = vector.broadcast %cst_28 : f32 to vector<12x32xf32>
    %44 = arith.maximumf %42, %43 : vector<12x32xf32>
    %45 = arith.mulf %44, %44 : vector<12x32xf32>
    %cst_29 = arith.constant dense<0.000000e+00> : vector<12xf32>
    %46 = vector.multi_reduction <add>, %45, %cst_29 [1] : vector<12x32xf32> to vector<12xf32>
    %47 = vector.shape_cast %46 : vector<12xf32> to vector<12x1xf32>
    %cst_30 = arith.constant 1.000000e-24 : f32
    %48 = vector.broadcast %cst_30 : f32 to vector<12x1xf32>
    %49 = arith.maximumf %47, %48 : vector<12x1xf32>
    %50 = math.rsqrt %49 : vector<12x1xf32>
    %51 = vector.broadcast %50 : vector<12x1xf32> to vector<12x32xf32>
    %52 = arith.mulf %44, %51 : vector<12x32xf32>
    %c0_31 = arith.constant 0 : index
    %c0_32 = arith.constant 0 : index
    %53 = vector.load %arg10[%c0_31, %c0_32] : memref<32x32xbf16, #tpu.memory_space<vmem>>, vector<32x32xbf16>
    %c0_33 = arith.constant 0 : index
    %c0_34 = arith.constant 0 : index
    %54 = vector.load %arg11[%c0_33, %c0_34] : memref<1x16xf32, #tpu.memory_space<vmem>>, vector<1x16xf32>
    %55 = arith.truncf %52 : vector<12x32xf32> to vector<12x32xbf16>
    %cst_35 = arith.constant dense<0.000000e+00> : vector<12x32xf32>
    %56 = tpu.matmul %55, %53, %cst_35 {dimension_numbers = #tpu.dot_dimension_numbers<[1], [0], [0], [1], [0, 0, 1, 1], [], []>} : vector<12x32xbf16>, vector<32x32xbf16>, vector<12x32xf32> -> vector<12x32xf32>
    %57 = vector.extract_strided_slice %56 {offsets = [0, 0], sizes = [12, 16], strides = [1, 1]} : vector<12x32xf32> to vector<12x16xf32>
    %58 = arith.truncf %57 : vector<12x16xf32> to vector<12x16xbf16>
    %cst_36 = arith.constant dense<0.000000e+00> : vector<24x16xf32>
    %59 = tpu.matmul %7, %58, %cst_36 {dimension_numbers = #tpu.dot_dimension_numbers<[0], [0], [1], [1], [0, 1, 1, 1], [], []>} : vector<12x24xbf16>, vector<12x16xbf16>, vector<24x16xf32> -> vector<24x16xf32>
    %60 = vector.extract_strided_slice %56 {offsets = [0, 16], sizes = [12, 16], strides = [1, 1]} : vector<12x32xf32> to vector<12x16xf32>
    %61 = arith.truncf %60 : vector<12x16xf32> to vector<12x16xbf16>
    %cst_37 = arith.constant dense<0.000000e+00> : vector<24x16xf32>
    %62 = tpu.matmul %14, %61, %cst_37 {dimension_numbers = #tpu.dot_dimension_numbers<[0], [0], [1], [1], [0, 1, 1, 1], [], []>} : vector<12x24xbf16>, vector<12x16xbf16>, vector<24x16xf32> -> vector<24x16xf32>
    %63 = arith.addf %59, %62 : vector<24x16xf32>
    %64 = vector.broadcast %54 : vector<1x16xf32> to vector<24x16xf32>
    %65 = arith.addf %63, %64 : vector<24x16xf32>
    %cst_38 = arith.constant 0.000000e+00 : f32
    %66 = vector.broadcast %cst_38 : f32 to vector<24x16xf32>
    %67 = arith.maximumf %65, %66 : vector<24x16xf32>
    %c0_39 = arith.constant 0 : index
    %c0_40 = arith.constant 0 : index
    %68 = vector.load %arg12[%c0_39, %c0_40] : memref<32x32xbf16, #tpu.memory_space<vmem>>, vector<32x32xbf16>
    %c0_41 = arith.constant 0 : index
    %c0_42 = arith.constant 0 : index
    %69 = vector.load %arg13[%c0_41, %c0_42] : memref<16x32xbf16, #tpu.memory_space<vmem>>, vector<16x32xbf16>
    %c0_43 = arith.constant 0 : index
    %c0_44 = arith.constant 0 : index
    %70 = vector.load %arg14[%c0_43, %c0_44] : memref<1x32xf32, #tpu.memory_space<vmem>>, vector<1x32xf32>
    %c0_45 = arith.constant 0 : index
    %c0_46 = arith.constant 0 : index
    %71 = vector.load %arg15[%c0_45, %c0_46] : memref<64x32xbf16, #tpu.memory_space<vmem>>, vector<64x32xbf16>
    %c0_47 = arith.constant 0 : index
    %c0_48 = arith.constant 0 : index
    %72 = vector.load %arg16[%c0_47, %c0_48] : memref<1x32xf32, #tpu.memory_space<vmem>>, vector<1x32xf32>
    %73 = arith.truncf %52 : vector<12x32xf32> to vector<12x32xbf16>
    %cst_49 = arith.constant dense<0.000000e+00> : vector<12x32xf32>
    %74 = tpu.matmul %73, %68, %cst_49 {dimension_numbers = #tpu.dot_dimension_numbers<[1], [0], [0], [1], [0, 0, 1, 1], [], []>} : vector<12x32xbf16>, vector<32x32xbf16>, vector<12x32xf32> -> vector<12x32xf32>
    %75 = arith.truncf %74 : vector<12x32xf32> to vector<12x32xbf16>
    %cst_50 = arith.constant dense<0.000000e+00> : vector<24x32xf32>
    %76 = tpu.matmul %7, %75, %cst_50 {dimension_numbers = #tpu.dot_dimension_numbers<[0], [0], [1], [1], [0, 1, 1, 1], [], []>} : vector<12x24xbf16>, vector<12x32xbf16>, vector<24x32xf32> -> vector<24x32xf32>
    %77 = arith.truncf %67 : vector<24x16xf32> to vector<24x16xbf16>
    %cst_51 = arith.constant dense<0.000000e+00> : vector<24x32xf32>
    %78 = tpu.matmul %77, %69, %cst_51 {dimension_numbers = #tpu.dot_dimension_numbers<[1], [0], [0], [1], [0, 0, 1, 1], [], []>} : vector<24x16xbf16>, vector<16x32xbf16>, vector<24x32xf32> -> vector<24x32xf32>
    %79 = arith.addf %76, %78 : vector<24x32xf32>
    %80 = vector.broadcast %70 : vector<1x32xf32> to vector<24x32xf32>
    %81 = arith.addf %79, %80 : vector<24x32xf32>
    %cst_52 = arith.constant 0.000000e+00 : f32
    %82 = vector.broadcast %cst_52 : f32 to vector<24x32xf32>
    %83 = arith.maximumf %81, %82 : vector<24x32xf32>
    %84 = arith.truncf %83 : vector<24x32xf32> to vector<24x32xbf16>
    %cst_53 = arith.constant dense<0.000000e+00> : vector<12x32xf32>
    %85 = tpu.matmul %14, %84, %cst_53 {dimension_numbers = #tpu.dot_dimension_numbers<[1], [0], [0], [1], [0, 0, 1, 1], [], []>} : vector<12x24xbf16>, vector<24x32xbf16>, vector<12x32xf32> -> vector<12x32xf32>
    %86 = vector.broadcast %15 : vector<12x1xf32> to vector<12x32xf32>
    %87 = arith.mulf %85, %86 : vector<12x32xf32>
    %88 = tpu.concatenate %87, %52 in 1 : vector<12x32xf32>, vector<12x32xf32> -> vector<12x64xf32>
    %89 = arith.truncf %88 : vector<12x64xf32> to vector<12x64xbf16>
    %cst_54 = arith.constant dense<0.000000e+00> : vector<12x32xf32>
    %90 = tpu.matmul %89, %71, %cst_54 {dimension_numbers = #tpu.dot_dimension_numbers<[1], [0], [0], [1], [0, 0, 1, 1], [], []>} : vector<12x64xbf16>, vector<64x32xbf16>, vector<12x32xf32> -> vector<12x32xf32>
    %91 = vector.broadcast %72 : vector<1x32xf32> to vector<12x32xf32>
    %92 = arith.addf %90, %91 : vector<12x32xf32>
    %cst_55 = arith.constant 0.000000e+00 : f32
    %93 = vector.broadcast %cst_55 : f32 to vector<12x32xf32>
    %94 = arith.maximumf %92, %93 : vector<12x32xf32>
    %95 = arith.mulf %94, %94 : vector<12x32xf32>
    %cst_56 = arith.constant dense<0.000000e+00> : vector<12xf32>
    %96 = vector.multi_reduction <add>, %95, %cst_56 [1] : vector<12x32xf32> to vector<12xf32>
    %97 = vector.shape_cast %96 : vector<12xf32> to vector<12x1xf32>
    %cst_57 = arith.constant 1.000000e-24 : f32
    %98 = vector.broadcast %cst_57 : f32 to vector<12x1xf32>
    %99 = arith.maximumf %97, %98 : vector<12x1xf32>
    %100 = math.rsqrt %99 : vector<12x1xf32>
    %101 = vector.broadcast %100 : vector<12x1xf32> to vector<12x32xf32>
    %102 = arith.mulf %94, %101 : vector<12x32xf32>
    %c0_58 = arith.constant 0 : index
    %c0_59 = arith.constant 0 : index
    %103 = vector.load %arg17[%c0_58, %c0_59] : memref<32x32xbf16, #tpu.memory_space<vmem>>, vector<32x32xbf16>
    %c0_60 = arith.constant 0 : index
    %c0_61 = arith.constant 0 : index
    %104 = vector.load %arg18[%c0_60, %c0_61] : memref<1x16xf32, #tpu.memory_space<vmem>>, vector<1x16xf32>
    %105 = arith.truncf %102 : vector<12x32xf32> to vector<12x32xbf16>
    %cst_62 = arith.constant dense<0.000000e+00> : vector<12x32xf32>
    %106 = tpu.matmul %105, %103, %cst_62 {dimension_numbers = #tpu.dot_dimension_numbers<[1], [0], [0], [1], [0, 0, 1, 1], [], []>} : vector<12x32xbf16>, vector<32x32xbf16>, vector<12x32xf32> -> vector<12x32xf32>
    %107 = vector.extract_strided_slice %106 {offsets = [0, 0], sizes = [12, 16], strides = [1, 1]} : vector<12x32xf32> to vector<12x16xf32>
    %108 = arith.truncf %107 : vector<12x16xf32> to vector<12x16xbf16>
    %cst_63 = arith.constant dense<0.000000e+00> : vector<24x16xf32>
    %109 = tpu.matmul %7, %108, %cst_63 {dimension_numbers = #tpu.dot_dimension_numbers<[0], [0], [1], [1], [0, 1, 1, 1], [], []>} : vector<12x24xbf16>, vector<12x16xbf16>, vector<24x16xf32> -> vector<24x16xf32>
    %110 = vector.extract_strided_slice %106 {offsets = [0, 16], sizes = [12, 16], strides = [1, 1]} : vector<12x32xf32> to vector<12x16xf32>
    %111 = arith.truncf %110 : vector<12x16xf32> to vector<12x16xbf16>
    %cst_64 = arith.constant dense<0.000000e+00> : vector<24x16xf32>
    %112 = tpu.matmul %14, %111, %cst_64 {dimension_numbers = #tpu.dot_dimension_numbers<[0], [0], [1], [1], [0, 1, 1, 1], [], []>} : vector<12x24xbf16>, vector<12x16xbf16>, vector<24x16xf32> -> vector<24x16xf32>
    %113 = arith.addf %109, %112 : vector<24x16xf32>
    %114 = vector.broadcast %104 : vector<1x16xf32> to vector<24x16xf32>
    %115 = arith.addf %113, %114 : vector<24x16xf32>
    %cst_65 = arith.constant 0.000000e+00 : f32
    %116 = vector.broadcast %cst_65 : f32 to vector<24x16xf32>
    %117 = arith.maximumf %115, %116 : vector<24x16xf32>
    %c0_66 = arith.constant 0 : index
    %c0_67 = arith.constant 0 : index
    %118 = vector.load %arg19[%c0_66, %c0_67] : memref<32x16xbf16, #tpu.memory_space<vmem>>, vector<32x16xbf16>
    %c0_68 = arith.constant 0 : index
    %c0_69 = arith.constant 0 : index
    %119 = vector.load %arg20[%c0_68, %c0_69] : memref<16x16xbf16, #tpu.memory_space<vmem>>, vector<16x16xbf16>
    %c0_70 = arith.constant 0 : index
    %c0_71 = arith.constant 0 : index
    %120 = vector.load %arg21[%c0_70, %c0_71] : memref<1x16xf32, #tpu.memory_space<vmem>>, vector<1x16xf32>
    %c0_72 = arith.constant 0 : index
    %c0_73 = arith.constant 0 : index
    %121 = vector.load %arg22[%c0_72, %c0_73] : memref<48x16xbf16, #tpu.memory_space<vmem>>, vector<48x16xbf16>
    %c0_74 = arith.constant 0 : index
    %c0_75 = arith.constant 0 : index
    %122 = vector.load %arg23[%c0_74, %c0_75] : memref<1x16xf32, #tpu.memory_space<vmem>>, vector<1x16xf32>
    %123 = arith.truncf %102 : vector<12x32xf32> to vector<12x32xbf16>
    %cst_76 = arith.constant dense<0.000000e+00> : vector<12x16xf32>
    %124 = tpu.matmul %123, %118, %cst_76 {dimension_numbers = #tpu.dot_dimension_numbers<[1], [0], [0], [1], [0, 0, 1, 1], [], []>} : vector<12x32xbf16>, vector<32x16xbf16>, vector<12x16xf32> -> vector<12x16xf32>
    %125 = arith.truncf %124 : vector<12x16xf32> to vector<12x16xbf16>
    %cst_77 = arith.constant dense<0.000000e+00> : vector<24x16xf32>
    %126 = tpu.matmul %7, %125, %cst_77 {dimension_numbers = #tpu.dot_dimension_numbers<[0], [0], [1], [1], [0, 1, 1, 1], [], []>} : vector<12x24xbf16>, vector<12x16xbf16>, vector<24x16xf32> -> vector<24x16xf32>
    %127 = arith.truncf %117 : vector<24x16xf32> to vector<24x16xbf16>
    %cst_78 = arith.constant dense<0.000000e+00> : vector<24x16xf32>
    %128 = tpu.matmul %127, %119, %cst_78 {dimension_numbers = #tpu.dot_dimension_numbers<[1], [0], [0], [1], [0, 0, 1, 1], [], []>} : vector<24x16xbf16>, vector<16x16xbf16>, vector<24x16xf32> -> vector<24x16xf32>
    %129 = arith.addf %126, %128 : vector<24x16xf32>
    %130 = vector.broadcast %120 : vector<1x16xf32> to vector<24x16xf32>
    %131 = arith.addf %129, %130 : vector<24x16xf32>
    %cst_79 = arith.constant 0.000000e+00 : f32
    %132 = vector.broadcast %cst_79 : f32 to vector<24x16xf32>
    %133 = arith.maximumf %131, %132 : vector<24x16xf32>
    %134 = arith.truncf %133 : vector<24x16xf32> to vector<24x16xbf16>
    %cst_80 = arith.constant dense<0.000000e+00> : vector<12x16xf32>
    %135 = tpu.matmul %14, %134, %cst_80 {dimension_numbers = #tpu.dot_dimension_numbers<[1], [0], [0], [1], [0, 0, 1, 1], [], []>} : vector<12x24xbf16>, vector<24x16xbf16>, vector<12x16xf32> -> vector<12x16xf32>
    %136 = vector.broadcast %15 : vector<12x1xf32> to vector<12x16xf32>
    %137 = arith.mulf %135, %136 : vector<12x16xf32>
    %138 = tpu.concatenate %137, %102 in 1 : vector<12x16xf32>, vector<12x32xf32> -> vector<12x48xf32>
    %139 = arith.truncf %138 : vector<12x48xf32> to vector<12x48xbf16>
    %cst_81 = arith.constant dense<0.000000e+00> : vector<12x16xf32>
    %140 = tpu.matmul %139, %121, %cst_81 {dimension_numbers = #tpu.dot_dimension_numbers<[1], [0], [0], [1], [0, 0, 1, 1], [], []>} : vector<12x48xbf16>, vector<48x16xbf16>, vector<12x16xf32> -> vector<12x16xf32>
    %141 = vector.broadcast %122 : vector<1x16xf32> to vector<12x16xf32>
    %142 = arith.addf %140, %141 : vector<12x16xf32>
    %cst_82 = arith.constant 0.000000e+00 : f32
    %143 = vector.broadcast %cst_82 : f32 to vector<12x16xf32>
    %144 = arith.maximumf %142, %143 : vector<12x16xf32>
    %145 = arith.mulf %144, %144 : vector<12x16xf32>
    %cst_83 = arith.constant dense<0.000000e+00> : vector<12xf32>
    %146 = vector.multi_reduction <add>, %145, %cst_83 [1] : vector<12x16xf32> to vector<12xf32>
    %147 = vector.shape_cast %146 : vector<12xf32> to vector<12x1xf32>
    %cst_84 = arith.constant 1.000000e-24 : f32
    %148 = vector.broadcast %cst_84 : f32 to vector<12x1xf32>
    %149 = arith.maximumf %147, %148 : vector<12x1xf32>
    %150 = math.rsqrt %149 : vector<12x1xf32>
    %151 = vector.broadcast %150 : vector<12x1xf32> to vector<12x16xf32>
    %152 = arith.mulf %144, %151 : vector<12x16xf32>
    %c0_85 = arith.constant 0 : index
    %c0_86 = arith.constant 0 : index
    %153 = vector.load %arg24[%c0_85, %c0_86] : memref<16x32xbf16, #tpu.memory_space<vmem>>, vector<16x32xbf16>
    %c0_87 = arith.constant 0 : index
    %c0_88 = arith.constant 0 : index
    %154 = vector.load %arg25[%c0_87, %c0_88] : memref<1x32xf32, #tpu.memory_space<vmem>>, vector<1x32xf32>
    %c0_89 = arith.constant 0 : index
    %c0_90 = arith.constant 0 : index
    %155 = vector.load %arg26[%c0_89, %c0_90] : memref<32x128xbf16, #tpu.memory_space<vmem>>, vector<32x128xbf16>
    %c0_91 = arith.constant 0 : index
    %c0_92 = arith.constant 0 : index
    %156 = vector.load %arg27[%c0_91, %c0_92] : memref<1x128xf32, #tpu.memory_space<vmem>>, vector<1x128xf32>
    %157 = arith.truncf %152 : vector<12x16xf32> to vector<12x16xbf16>
    %cst_93 = arith.constant dense<0.000000e+00> : vector<12x32xf32>
    %158 = tpu.matmul %157, %153, %cst_93 {dimension_numbers = #tpu.dot_dimension_numbers<[1], [0], [0], [1], [0, 0, 1, 1], [], []>} : vector<12x16xbf16>, vector<16x32xbf16>, vector<12x32xf32> -> vector<12x32xf32>
    %159 = vector.broadcast %154 : vector<1x32xf32> to vector<12x32xf32>
    %160 = arith.addf %158, %159 : vector<12x32xf32>
    %cst_94 = arith.constant 0.000000e+00 : f32
    %161 = vector.broadcast %cst_94 : f32 to vector<12x32xf32>
    %162 = arith.maximumf %160, %161 : vector<12x32xf32>
    %163 = arith.truncf %162 : vector<12x32xf32> to vector<12x32xbf16>
    %cst_95 = arith.constant dense<0.000000e+00> : vector<12x128xf32>
    %164 = tpu.matmul %163, %155, %cst_95 {dimension_numbers = #tpu.dot_dimension_numbers<[1], [0], [0], [1], [0, 0, 1, 1], [], []>} : vector<12x32xbf16>, vector<32x128xbf16>, vector<12x128xf32> -> vector<12x128xf32>
    %165 = vector.broadcast %156 : vector<1x128xf32> to vector<12x128xf32>
    %166 = arith.addf %164, %165 : vector<12x128xf32>
    %c0_96 = arith.constant 0 : index
    %c0_97 = arith.constant 0 : index
    %167 = vector.load %arg28[%c0_96, %c0_97] : memref<12x128xf32, #tpu.memory_space<vmem>>, vector<12x128xf32>
    tpu.vector_store %arg28[%c0_96, %c0_97], %166 {strides = array<i32>} : memref<12x128xf32, #tpu.memory_space<vmem>>, vector<12x128xf32>,
    return
  }
}

</mosaic_0001>

<llo_original>
// kernel: gnn_forward.1
$region0: #{gnn_forward.1}
  #allocation0 [shape = 'u32[]', space=smem, size = 0x4, offset = 0x4, fixed_abs, tag = 'smem constant byte address 0x4 - core index']
  #allocation1 [shape = 'u32[72,128]{1,0:T(1,128)}', space=vmem, size = 0x9000, scoped, tag = 'internal scratch']
  %s0 = inlined_call_operand.vmem [shape: s32[1,24], index: 0, kind: input, shape index: {}]
  %s1 = inlined_call_operand.vmem [shape: s32[1,24], index: 1, kind: input, shape index: {}]
  %s2 = inlined_call_operand.vmem [shape: f32[12,1], index: 2, kind: input, shape index: {}]
  %s3 = inlined_call_operand.vmem [shape: f32[12,16], index: 3, kind: input, shape index: {}]
  %s4 = inlined_call_operand.vmem [shape: f32[24,8], index: 4, kind: input, shape index: {}]
  %s5 = inlined_call_operand.vmem [shape: bf16[16,32], index: 5, kind: input, shape index: {}]
  %s6 = inlined_call_operand.vmem [shape: bf16[8,32], index: 6, kind: input, shape index: {}]
  %s7 = inlined_call_operand.vmem [shape: f32[1,32], index: 7, kind: input, shape index: {}]
  %s8 = inlined_call_operand.vmem [shape: bf16[48,32], index: 8, kind: input, shape index: {}]
  %s9 = inlined_call_operand.vmem [shape: f32[1,32], index: 9, kind: input, shape index: {}]
  %s10 = inlined_call_operand.vmem [shape: bf16[32,32], index: 10, kind: input, shape index: {}]
  %s11 = inlined_call_operand.vmem [shape: f32[1,16], index: 11, kind: input, shape index: {}]
  %s12 = inlined_call_operand.vmem [shape: bf16[32,32], index: 12, kind: input, shape index: {}]
  %s13 = inlined_call_operand.vmem [shape: bf16[16,32], index: 13, kind: input, shape index: {}]
  %s14 = inlined_call_operand.vmem [shape: f32[1,32], index: 14, kind: input, shape index: {}]
  %s15 = inlined_call_operand.vmem [shape: bf16[64,32], index: 15, kind: input, shape index: {}]
  %s16 = inlined_call_operand.vmem [shape: f32[1,32], index: 16, kind: input, shape index: {}]
  %s17 = inlined_call_operand.vmem [shape: bf16[32,32], index: 17, kind: input, shape index: {}]
  %s18 = inlined_call_operand.vmem [shape: f32[1,16], index: 18, kind: input, shape index: {}]
  %s19 = inlined_call_operand.vmem [shape: bf16[32,16], index: 19, kind: input, shape index: {}]
  %s20 = inlined_call_operand.vmem [shape: bf16[16,16], index: 20, kind: input, shape index: {}]
  %s21 = inlined_call_operand.vmem [shape: f32[1,16], index: 21, kind: input, shape index: {}]
  %s22 = inlined_call_operand.vmem [shape: bf16[48,16], index: 22, kind: input, shape index: {}]
  %s23 = inlined_call_operand.vmem [shape: f32[1,16], index: 23, kind: input, shape index: {}]
  %s24 = inlined_call_operand.vmem [shape: bf16[16,32], index: 24, kind: input, shape index: {}]
  %s25 = inlined_call_operand.vmem [shape: f32[1,32], index: 25, kind: input, shape index: {}]
  %s26 = inlined_call_operand.vmem [shape: bf16[32,128], index: 26, kind: input, shape index: {}]
  %s27 = inlined_call_operand.vmem [shape: f32[1,128], index: 27, kind: input, shape index: {}]
  %s28 = inlined_call_operand.hbm [shape: f32[12,128], index: 28, kind: output, shape index: {}]
  %s29 = sld [smem:[#allocation0]]
  $region122: #{gnn_forward.1} parent=0
    _
  %s31 = ssub.s32 1, %s29
  %s32 = scalar_select 0, %s31, %s29
  $region1: #{gnn_forward.1} parent=0
    #allocation2 [shape = 'u8[8192]{0}', space=vmem, size = 0x2000, scoped, tag = 'output window, operand 0, single buffered']
    #allocation3 [shape = 's32[1]{0}', space=sflag, size = 0x4, scoped, tag = 'scoped memory for gnn_forward.1']
    %33 = vsyncpa [#allocation3], 0
    // Predicated region
    $region2: #{gnn_forward.1} parent=1 // pred_check
      _
    $region3: #{gnn_forward.1} parent=1 // pred_check_branch
      %35 = sbr.rel (0) target = $region5
    $region4: #{gnn_forward.1} parent=1 // pred_region
      _
    $region5: #{gnn_forward.1} parent=1 // pred_fallthru
      _
    // Predicated region
    $region6: #{gnn_forward.1} parent=1 // pred_check
      _
    $region7: #{gnn_forward.1} parent=1 // pred_check_branch
      %37 = sbr.rel (0) target = $region9
    $region8: #{gnn_forward.1} parent=1 // pred_region
      _
    $region9: #{gnn_forward.1} parent=1 // pred_fallthru
      _
    // Predicated region
    $region10: #{gnn_forward.1} parent=1 // pred_check
      _
    $region11: #{gnn_forward.1} parent=1 // pred_check_branch
      %39 = sbr.rel (0) target = $region13
    $region12: #{gnn_forward.1} parent=1 // pred_region
      _
    $region13: #{gnn_forward.1} parent=1 // pred_fallthru
      _
    // Predicated region
    $region14: #{gnn_forward.1} parent=1 // pred_check
      _
    $region15: #{gnn_forward.1} parent=1 // pred_check_branch
      %41 = sbr.rel (0) target = $region17
    $region16: #{gnn_forward.1} parent=1 // pred_region
      _
    $region17: #{gnn_forward.1} parent=1 // pred_fallthru
      _
    // Predicated region
    $region18: #{gnn_forward.1} parent=1 // pred_check
      _
    $region19: #{gnn_forward.1} parent=1 // pred_check_branch
      %43 = sbr.rel (0) target = $region21
    $region20: #{gnn_forward.1} parent=1 // pred_region
      _
    $region21: #{gnn_forward.1} parent=1 // pred_fallthru
      _
    // Predicated region
    $region22: #{gnn_forward.1} parent=1 // pred_check
      _
    $region23: #{gnn_forward.1} parent=1 // pred_check_branch
      %45 = sbr.rel (0) target = $region25
    $region24: #{gnn_forward.1} parent=1 // pred_region
      _
    $region25: #{gnn_forward.1} parent=1 // pred_fallthru
      _
    // Predicated region
    $region26: #{gnn_forward.1} parent=1 // pred_check
      _
    $region27: #{gnn_forward.1} parent=1 // pred_check_branch
      %47 = sbr.rel (0) target = $region29
    $region28: #{gnn_forward.1} parent=1 // pred_region
      _
    $region29: #{gnn_forward.1} parent=1 // pred_fallthru
      _
    // Predicated region
    $region30: #{gnn_forward.1} parent=1 // pred_check
      _
    $region31: #{gnn_forward.1} parent=1 // pred_check_branch
      %49 = sbr.rel (0) target = $region33
    $region32: #{gnn_forward.1} parent=1 // pred_region
      _
    $region33: #{gnn_forward.1} parent=1 // pred_fallthru
      _
    // Predicated region
    $region34: #{gnn_forward.1} parent=1 // pred_check
      _
    $region35: #{gnn_forward.1} parent=1 // pred_check_branch
      %51 = sbr.rel (0) target = $region37
    $region36: #{gnn_forward.1} parent=1 // pred_region
      _
    $region37: #{gnn_forward.1} parent=1 // pred_fallthru
      _
    // Predicated region
    $region38: #{gnn_forward.1} parent=1 // pred_check
      _
    $region39: #{gnn_forward.1} parent=1 // pred_check_branch
      %53 = sbr.rel (0) target = $region41
    $region40: #{gnn_forward.1} parent=1 // pred_region
      _
    $region41: #{gnn_forward.1} parent=1 // pred_fallthru
      _
    // Predicated region
    $region42: #{gnn_forward.1} parent=1 // pred_check
      _
    $region43: #{gnn_forward.1} parent=1 // pred_check_branch
      %55 = sbr.rel (0) target = $region45
    $region44: #{gnn_forward.1} parent=1 // pred_region
      _
    $region45: #{gnn_forward.1} parent=1 // pred_fallthru
      _
    // Predicated region
    $region46: #{gnn_forward.1} parent=1 // pred_check
      _
    $region47: #{gnn_forward.1} parent=1 // pred_check_branch
      %57 = sbr.rel (0) target = $region49
    $region48: #{gnn_forward.1} parent=1 // pred_region
      _
    $region49: #{gnn_forward.1} parent=1 // pred_fallthru
      _
    // Predicated region
    $region50: #{gnn_forward.1} parent=1 // pred_check
      _
    $region51: #{gnn_forward.1} parent=1 // pred_check_branch
      %59 = sbr.rel (0) target = $region53
    $region52: #{gnn_forward.1} parent=1 // pred_region
      _
    $region53: #{gnn_forward.1} parent=1 // pred_fallthru
      _
    // Predicated region
    $region54: #{gnn_forward.1} parent=1 // pred_check
      _
    $region55: #{gnn_forward.1} parent=1 // pred_check_branch
      %61 = sbr.rel (0) target = $region57
    $region56: #{gnn_forward.1} parent=1 // pred_region
      _
    $region57: #{gnn_forward.1} parent=1 // pred_fallthru
      _
    // Predicated region
    $region58: #{gnn_forward.1} parent=1 // pred_check
      _
    $region59: #{gnn_forward.1} parent=1 // pred_check_branch
      %63 = sbr.rel (0) target = $region61
    $region60: #{gnn_forward.1} parent=1 // pred_region
      _
    $region61: #{gnn_forward.1} parent=1 // pred_fallthru
      _
    // Predicated region
    $region62: #{gnn_forward.1} parent=1 // pred_check
      _
    $region63: #{gnn_forward.1} parent=1 // pred_check_branch
      %65 = sbr.rel (0) target = $region65
    $region64: #{gnn_forward.1} parent=1 // pred_region
      _
    $region65: #{gnn_forward.1} parent=1 // pred_fallthru
      _
    // Predicated region
    $region66: #{gnn_forward.1} parent=1 // pred_check
      _
    $region67: #{gnn_forward.1} parent=1 // pred_check_branch
      %67 = sbr.rel (0) target = $region69
    $region68: #{gnn_forward.1} parent=1 // pred_region
      _
    $region69: #{gnn_forward.1} parent=1 // pred_fallthru
      _
    // Predicated region
    $region70: #{gnn_forward.1} parent=1 // pred_check
      _
    $region71: #{gnn_forward.1} parent=1 // pred_check_branch
      %69 = sbr.rel (0) target = $region73
    $region72: #{gnn_forward.1} parent=1 // pred_region
      _
    $region73: #{gnn_forward.1} parent=1 // pred_fallthru
      _
    // Predicated region
    $region74: #{gnn_forward.1} parent=1 // pred_check
      _
    $region75: #{gnn_forward.1} parent=1 // pred_check_branch
      %71 = sbr.rel (0) target = $region77
    $region76: #{gnn_forward.1} parent=1 // pred_region
      _
    $region77: #{gnn_forward.1} parent=1 // pred_fallthru
      _
    // Predicated region
    $region78: #{gnn_forward.1} parent=1 // pred_check
      _
    $region79: #{gnn_forward.1} parent=1 // pred_check_branch
      %73 = sbr.rel (0) target = $region81
    $region80: #{gnn_forward.1} parent=1 // pred_region
      _
    $region81: #{gnn_forward.1} parent=1 // pred_fallthru
      _
    // Predicated region
    $region82: #{gnn_forward.1} parent=1 // pred_check
      _
    $region83: #{gnn_forward.1} parent=1 // pred_check_branch
      %75 = sbr.rel (0) target = $region85
    $region84: #{gnn_forward.1} parent=1 // pred_region
      _
    $region85: #{gnn_forward.1} parent=1 // pred_fallthru
      _
    // Predicated region
    $region86: #{gnn_forward.1} parent=1 // pred_check
      _
    $region87: #{gnn_forward.1} parent=1 // pred_check_branch
      %77 = sbr.rel (0) target = $region89
    $region88: #{gnn_forward.1} parent=1 // pred_region
      _
    $region89: #{gnn_forward.1} parent=1 // pred_fallthru
      _
    // Predicated region
    $region90: #{gnn_forward.1} parent=1 // pred_check
      _
    $region91: #{gnn_forward.1} parent=1 // pred_check_branch
      %79 = sbr.rel (0) target = $region93
    $region92: #{gnn_forward.1} parent=1 // pred_region
      _
    $region93: #{gnn_forward.1} parent=1 // pred_fallthru
      _
    // Predicated region
    $region94: #{gnn_forward.1} parent=1 // pred_check
      _
    $region95: #{gnn_forward.1} parent=1 // pred_check_branch
      %81 = sbr.rel (0) target = $region97
    $region96: #{gnn_forward.1} parent=1 // pred_region
      _
    $region97: #{gnn_forward.1} parent=1 // pred_fallthru
      _
    // Predicated region
    $region98: #{gnn_forward.1} parent=1 // pred_check
      _
    $region99: #{gnn_forward.1} parent=1 // pred_check_branch
      %83 = sbr.rel (0) target = $region101
    $region100: #{gnn_forward.1} parent=1 // pred_region
      _
    $region101: #{gnn_forward.1} parent=1 // pred_fallthru
      _
    // Predicated region
    $region102: #{gnn_forward.1} parent=1 // pred_check
      _
    $region103: #{gnn_forward.1} parent=1 // pred_check_branch
      %85 = sbr.rel (0) target = $region105
    $region104: #{gnn_forward.1} parent=1 // pred_region
      _
    $region105: #{gnn_forward.1} parent=1 // pred_fallthru
      _
    // Predicated region
    $region106: #{gnn_forward.1} parent=1 // pred_check
      _
    $region107: #{gnn_forward.1} parent=1 // pred_check_branch
      %87 = sbr.rel (0) target = $region109
    $region108: #{gnn_forward.1} parent=1 // pred_region
      _
    $region109: #{gnn_forward.1} parent=1 // pred_fallthru
      _
    // Predicated region
    $region110: #{gnn_forward.1} parent=1 // pred_check
      _
    $region111: #{gnn_forward.1} parent=1 // pred_check_branch
      %89 = sbr.rel (0) target = $region113
    $region112: #{gnn_forward.1} parent=1 // pred_region
      _
    $region113: #{gnn_forward.1} parent=1 // pred_fallthru
      _
    %v91 = vlaneseq
    %v92 = vshrl.u32 %v91, 7
    %v93 = vadd.s32 %v92, 8
    %v94 = vld [vmem:[%s0] sm:$0x1]
    %v95 = vperm.slane %v94, 0
    %vm96 = vcmp.eq.s32.totalorder %v95, %v92
    %vm97 = vcmp.eq.s32.totalorder %v95, %v93
    %v98 = vsel %vm96, 1.0, 0.0
    %v99 = vsel %vm97, 1.0, 0.0
    %v100 = vpack.c.bf16 %v99, %v98
    %v101 = vld [vmem:[%s1] sm:$0x1]
    %v102 = vperm.slane %v101, 0
    %vm103 = vcmp.eq.s32.totalorder %v102, %v92
    %vm104 = vcmp.eq.s32.totalorder %v102, %v93
    %v105 = vsel %vm103, 1.0, 0.0
    %v106 = vsel %vm104, 1.0, 0.0
    %v107 = vpack.c.bf16 %v106, %v105
    %v108 = vld [vmem:[%s2] sm:$0xff]
    %v109 = vld [vmem:[%s2 + $0x8] sm:$0xf]
    %v110 = vld [vmem:[%s3] sm:$0xff]
    %v111 = vld [vmem:[%s3 + $0x8] sm:$0xf]
    %v112 = vld [vmem:[%s4] sm:$0xff]
    %v113 = vld [vmem:[%s4 + $0x8] sm:$0xff]
    %v114 = vld [vmem:[%s4 + $0x10] sm:$0xff]
    %v115 = vld [vmem:[%s5] sm:$0xf]
    %v116 = vld [vmem:[%s5 + $0x4] sm:$0xf]
    %v117 = vld [vmem:[%s6] sm:$0xf]
    %v118 = vld [vmem:[%s7] sm:$0x1]
    %v119 = vld [vmem:[%s8] sm:$0xf]
    %v120 = vld [vmem:[%s8 + $0x4] sm:$0xf]
    %v121 = vld [vmem:[%s8 + $0x8] sm:$0xf]
    %v122 = vld [vmem:[%s8 + $0xc] sm:$0xf]
    %v123 = vld [vmem:[%s8 + $0x10] sm:$0xf]
    %v124 = vld [vmem:[%s8 + $0x14] sm:$0xf]
    %v125 = vld [vmem:[%s9] sm:$0x1]
    %v126 = vpack.c.bf16 %v111, %v110
    %v129 = vunpack.c.l.b16 %v115
    %v130 = vunpack.c.l.b16 %v116
    %v131 = vpack.c.b16 %v130, %v129
    %vm133 = vcmask 130048
    %v135 = vsel %vm133, %v126, 0
    %137 = vmatpush.bf16.msra.mxu0 0
    %138 = vmatpush.bf16.msra.mxu0 0
    %139 = vmatpush.bf16.msra.mxu0 0
    %140 = vmatpush.bf16.msra.mxu0 0
    %141 = vmatpush.bf16.msra.mxu0 0
    %142 = vmatpush.bf16.msra.mxu0 0
    %143 = vmatpush.bf16.msra.mxu0 0
    %144 = vmatpush.bf16.msra.mxu0 %v131
    %145 = vmatmul.bf16.gmra.mxu0 %v135
    %v146 = vpop.f32.mrf.mxu0
    %v147 = vadd.f32 0.0, %v146
    %v148 = vpop.f32.mrf.mxu0
    %v149 = vadd.f32 0.0, %v148
    %150 = vdwg.mxu0
    %v151 = vpack.c.bf16 %v149, %v147
    %v152 = vpack.c.bf16 %v113, %v112
    %v153 = vpack.c.bf16 %v114, %v114
    %vm154 = vcmask 64512
    %v156 = vsel %vm154, %v152, 0
    %v159 = vsel %vm154, %v153, 0
    %vm161 = vcmask 1043456
    %v163 = vsel %vm161, %v117, 0
    %165 = vmatpush.bf16.msra.mxu0 0
    %166 = vmatpush.bf16.msra.mxu0 0
    %167 = vmatpush.bf16.msra.mxu0 0
    %168 = vmatpush.bf16.msra.mxu0 0
    %169 = vmatpush.bf16.msra.mxu0 0
    %170 = vmatpush.bf16.msra.mxu0 0
    %171 = vmatpush.bf16.msra.mxu0 0
    %172 = vmatpush.bf16.msra.mxu0 %v163
    %173 = vmatmul.bf16.gmra.mxu0 %v156
    %v174 = vpop.f32.mrf.mxu0
    %v175 = vadd.f32 0.0, %v174
    %v176 = vpop.f32.mrf.mxu0
    %v177 = vadd.f32 0.0, %v176
    %178 = vmatmul.bf16.gmra.mxu0 %v159
    %v179 = vpop.f32.mrf.mxu0
    %v180 = vadd.f32 0.0, %v179
    %v181 = vpop.f32.mrf.mxu0
    %182 = vdwg.mxu0
    %183 = vxpose.xlu0.c.b16.start [1/8] %v100, 128
    %184 = vxpose.xlu0.c.b16.cont [2/8] 0, 128
    %185 = vxpose.xlu0.c.b16.cont [3/8] 0, 128
    %186 = vxpose.xlu0.c.b16.cont [4/8] 0, 128
    %187 = vxpose.xlu0.c.b16.cont [5/8] 0, 128
    %188 = vxpose.xlu0.c.b16.cont [6/8] 0, 128
    %189 = vxpose.xlu0.c.b16.cont [7/8] 0, 128
    %190 = vxpose.xlu0.c.b16.end [8/8] 0, 128
    %v191 = vpop.trf.xlu0
    %v192 = vpop.trf.xlu0
    %v193 = vpop.trf.xlu0
    %v194 = vpop.trf.xlu0
    %v195 = vpop.trf.xlu0
    %v196 = vpop.trf.xlu0
    %v197 = vpop.trf.xlu0
    %v198 = vpop.trf.xlu0
    %vm199 = vcmask 97280
    %v201 = vsel %vm199, %v191, 0
    %v204 = vsel %vm199, %v192, 0
    %vm206 = vcmask 1045504
    %v208 = vsel %vm206, %v151, 0
    %210 = vmatpush.bf16.msra.mxu0 0
    %211 = vmatpush.bf16.msra.mxu0 0
    %212 = vmatpush.bf16.msra.mxu0 0
    %213 = vmatpush.bf16.msra.mxu0 0
    %214 = vmatpush.bf16.msra.mxu0 0
    %215 = vmatpush.bf16.msra.mxu0 0
    %216 = vmatpush.bf16.msra.mxu0 0
    %217 = vmatpush.bf16.msra.mxu0 %v208
    %218 = vmatmul.bf16.gmra.mxu0 %v201
    %v219 = vpop.f32.mrf.mxu0
    %v220 = vadd.f32 %v175, %v219
    %v221 = vpop.f32.mrf.mxu0
    %v222 = vadd.f32 %v177, %v221
    %223 = vmatmul.bf16.gmra.mxu0 %v204
    %v224 = vpop.f32.mrf.mxu0
    %v225 = vadd.f32 %v180, %v224
    %v226 = vpop.f32.mrf.mxu0
    %227 = vdwg.mxu0
    %v229 = vperm.slane %v118, 0
    %v231 = vadd.f32 %v220, %v229
    %v232 = vadd.f32 %v222, %v229
    %v233 = vadd.f32 %v225, %v229
    %v234 = vmax.f32 %v231, 0.0
    %v235 = vmax.f32 %v232, 0.0
    %v236 = vmax.f32 %v233, 0.0
    %v237 = vpack.c.bf16 %v235, %v234
    %v238 = vpack.c.bf16 %v236, %v236
    %vm239 = vcmask 195584
    %v241 = vsel %vm239, %v107, 0
    %v244 = vsel %vm161, %v238, 0
    %246 = vmatpush.bf16.msra.mxu0 0
    %247 = vmatpush.bf16.msra.mxu0 0
    %248 = vmatpush.bf16.msra.mxu0 0
    %249 = vmatpush.bf16.msra.mxu0 0
    %250 = vmatpush.bf16.msra.mxu0 0
    %251 = vmatpush.bf16.msra.mxu0 0
    %252 = vmatpush.bf16.msra.mxu0 %v244
    %253 = vmatpush.bf16.msra.mxu0 %v237
    %254 = vmatmul.bf16.gmra.mxu0 %v241
    %v255 = vpop.f32.mrf.mxu0
    %v256 = vadd.f32 0.0, %v255
    %v257 = vpop.f32.mrf.mxu0
    %v258 = vadd.f32 0.0, %v257
    %259 = vdwg.mxu0
    %261 = vset.pattern.permute.xlu0 0
    %262 = vperm.xlu0 %261, %v108
    %v263 = vpop.permute.xlu0 %262
    %266 = vset.pattern.permute.xlu0 0
    %267 = vperm.xlu0 %266, %v109
    %v268 = vpop.permute.xlu0 %267
    %v270 = vmul.f32 %v256, %v263
    %v271 = vmul.f32 %v258, %v268
    %274 = vrot.lane.b32.xlu0 %v110, 32
    %v275 = vpop.permute.xlu0 %274
    %276 = vrot.lane.b32.xlu0 %v111, 32
    %v277 = vpop.permute.xlu0 %276
    %vm280 = vcmask 261120
    %v281 = vsel %vm280, %v270, %v275
    %v282 = vsel %vm280, %v271, %v277
    %v283 = vpack.c.bf16 %v282, %v281
    %v285 = vperm.slane %v125, 0
    %v293 = vunpack.c.l.b16 %v119
    %v294 = vunpack.c.l.b16 %v120
    %v295 = vunpack.c.l.b16 %v121
    %v296 = vunpack.c.l.b16 %v122
    %v297 = vunpack.c.l.b16 %v123
    %v298 = vunpack.c.l.b16 %v124
    %v299 = vpack.c.b16 %v294, %v293
    %v300 = vpack.c.b16 %v296, %v295
    %v301 = vpack.c.b16 %v298, %v297
    %vm305 = vcmask 392192
    %v307 = vsel %vm305, %v283, 0
    %309 = vmatpush.bf16.msra.mxu0 0
    %310 = vmatpush.bf16.msra.mxu0 0
    %311 = vmatpush.bf16.msra.mxu0 0
    %312 = vmatpush.bf16.msra.mxu0 0
    %313 = vmatpush.bf16.msra.mxu0 0
    %314 = vmatpush.bf16.msra.mxu0 %v301
    %315 = vmatpush.bf16.msra.mxu0 %v300
    %316 = vmatpush.bf16.msra.mxu0 %v299
    %317 = vmatmul.bf16.gmra.mxu0 %v307
    %v318 = vpop.f32.mrf.mxu0
    %v319 = vadd.f32 %v285, %v318
    %v320 = vpop.f32.mrf.mxu0
    %v321 = vadd.f32 %v285, %v320
    %322 = vdwg.mxu0
    %v323 = vmax.f32 %v319, 0.0
    %v324 = vmax.f32 %v321, 0.0
    %v325 = vmul.f32 %v323, %v323
    %v326 = vmul.f32 %v324, %v324
    %v327 = vsel %vm280, %v325, 0.0
    %328 = vadd.xlane.f32.xlu0 %v327
    %v329 = vpop.xlane.xlu0 %328
    %vm330 = vcmask 257024
    %v331 = vsel %vm330, %v326, 0.0
    %332 = vadd.xlane.f32.xlu0 %v331
    %v333 = vpop.xlane.xlu0 %332
    %v334 = vmax.f32 %v329, 1e-24
    %v335 = vmax.f32 %v333, 1e-24
    %v336 = vrsqrt.pop %v334
    %v337 = vmul.f32 %v336, %v334
    %v338 = vmul.f32 %v337, %v336
    %v339 = vmul.f32 0.5, %v338
    %v340 = vsub.f32 1.5, %v339
    %v341 = vmul.f32 %v336, %v340
    %vm342 = vweird.f32 %v334
    %vm343 = vweird.f32 %v336
    %vm344 = vmor %vm342, %vm343
    %v345 = vsel %vm344, %v336, %v341
    %v346 = vrsqrt.pop %v335
    %v347 = vmul.f32 %v346, %v335
    %v348 = vmul.f32 %v347, %v346
    %v349 = vmul.f32 0.5, %v348
    %v350 = vsub.f32 1.5, %v349
    %v351 = vmul.f32 %v346, %v350
    %vm352 = vweird.f32 %v335
    %vm353 = vweird.f32 %v346
    %vm354 = vmor %vm352, %vm353
    %v355 = vsel %vm354, %v346, %v351
    %v356 = vmul.f32 %v323, %v345
    %v357 = vmul.f32 %v324, %v355
    %v358 = vld [vmem:[%s10] sm:$0xf]
    %v359 = vld [vmem:[%s10 + $0x4] sm:$0xf]
    %v360 = vld [vmem:[%s10 + $0x8] sm:$0xf]
    %v361 = vld [vmem:[%s10 + $0xc] sm:$0xf]
    %v362 = vld [vmem:[%s11] sm:$0x1]
    %v363 = vpack.c.bf16 %v357, %v356
    %v368 = vunpack.c.l.b16 %v358
    %v369 = vunpack.c.l.b16 %v359
    %v370 = vunpack.c.l.b16 %v360
    %v371 = vunpack.c.l.b16 %v361
    %v372 = vpack.c.b16 %v369, %v368
    %v373 = vpack.c.b16 %v371, %v370
    %v377 = vsel %vm280, %v363, 0
    %379 = vmatpush.bf16.msra.mxu0 0
    %380 = vmatpush.bf16.msra.mxu0 0
    %381 = vmatpush.bf16.msra.mxu0 0
    %382 = vmatpush.bf16.msra.mxu0 0
    %383 = vmatpush.bf16.msra.mxu0 0
    %384 = vmatpush.bf16.msra.mxu0 0
    %385 = vmatpush.bf16.msra.mxu0 %v373
    %386 = vmatpush.bf16.msra.mxu0 %v372
    %387 = vmatmul.bf16.gmra.mxu0 %v377
    %v388 = vpop.f32.mrf.mxu0
    %v389 = vadd.f32 0.0, %v388
    %v390 = vpop.f32.mrf.mxu0
    %v391 = vadd.f32 0.0, %v390
    %392 = vdwg.mxu0
    %v393 = vpack.c.bf16 %v391, %v389
    %394 = vxpose.xlu0.c.b16.start [1/8] %v107, 128
    %395 = vxpose.xlu0.c.b16.cont [2/8] 0, 128
    %396 = vxpose.xlu0.c.b16.cont [3/8] 0, 128
    %397 = vxpose.xlu0.c.b16.cont [4/8] 0, 128
    %398 = vxpose.xlu0.c.b16.cont [5/8] 0, 128
    %399 = vxpose.xlu0.c.b16.cont [6/8] 0, 128
    %400 = vxpose.xlu0.c.b16.cont [7/8] 0, 128
    %401 = vxpose.xlu0.c.b16.end [8/8] 0, 128
    %v402 = vpop.trf.xlu0
    %v403 = vpop.trf.xlu0
    %v404 = vpop.trf.xlu0
    %v405 = vpop.trf.xlu0
    %v406 = vpop.trf.xlu0
    %v407 = vpop.trf.xlu0
    %v408 = vpop.trf.xlu0
    %v409 = vpop.trf.xlu0
    %411 = vrot.lane.b32.xlu0 %v393, 112
    %v412 = vpop.permute.xlu0 %411
    %v414 = vsel %vm199, %v402, 0
    %v417 = vsel %vm199, %v403, 0
    %v420 = vsel %vm206, %v412, 0
    %422 = vmatpush.bf16.msra.mxu0 0
    %423 = vmatpush.bf16.msra.mxu0 0
    %424 = vmatpush.bf16.msra.mxu0 0
    %425 = vmatpush.bf16.msra.mxu0 0
    %426 = vmatpush.bf16.msra.mxu0 0
    %427 = vmatpush.bf16.msra.mxu0 0
    %428 = vmatpush.bf16.msra.mxu0 0
    %429 = vmatpush.bf16.msra.mxu0 %v420
    %430 = vmatmul.bf16.gmra.mxu0 %v414
    %v431 = vpop.f32.mrf.mxu0
    %v432 = vadd.f32 0.0, %v431
    %v433 = vpop.f32.mrf.mxu0
    %v434 = vadd.f32 0.0, %v433
    %435 = vmatmul.bf16.gmra.mxu0 %v417
    %v436 = vpop.f32.mrf.mxu0
    %v437 = vadd.f32 0.0, %v436
    %v438 = vpop.f32.mrf.mxu0
    %439 = vdwg.mxu0
    %v441 = vsel %vm206, %v393, 0
    %443 = vmatpush.bf16.msra.mxu0 0
    %444 = vmatpush.bf16.msra.mxu0 0
    %445 = vmatpush.bf16.msra.mxu0 0
    %446 = vmatpush.bf16.msra.mxu0 0
    %447 = vmatpush.bf16.msra.mxu0 0
    %448 = vmatpush.bf16.msra.mxu0 0
    %449 = vmatpush.bf16.msra.mxu0 0
    %450 = vmatpush.bf16.msra.mxu0 %v441
    %451 = vmatmul.bf16.gmra.mxu0 %v201
    %v452 = vpop.f32.mrf.mxu0
    %v453 = vadd.f32 %v432, %v452
    %v454 = vpop.f32.mrf.mxu0
    %v455 = vadd.f32 %v434, %v454
    %456 = vmatmul.bf16.gmra.mxu0 %v204
    %v457 = vpop.f32.mrf.mxu0
    %v458 = vadd.f32 %v437, %v457
    %v459 = vpop.f32.mrf.mxu0
    %460 = vdwg.mxu0
    %v462 = vperm.slane %v362, 0
    %v464 = vadd.f32 %v453, %v462
    %v465 = vadd.f32 %v455, %v462
    %v466 = vadd.f32 %v458, %v462
    %v467 = vmax.f32 %v464, 0.0
    %v468 = vmax.f32 %v465, 0.0
    %v469 = vmax.f32 %v466, 0.0
    %v470 = vld [vmem:[%s12] sm:$0xf]
    %v471 = vld [vmem:[%s12 + $0x4] sm:$0xf]
    %v472 = vld [vmem:[%s12 + $0x8] sm:$0xf]
    %v473 = vld [vmem:[%s12 + $0xc] sm:$0xf]
    %v474 = vld [vmem:[%s13] sm:$0xf]
    %v475 = vld [vmem:[%s13 + $0x4] sm:$0xf]
    %v476 = vld [vmem:[%s14] sm:$0x1]
    %v477 = vld [vmem:[%s15] sm:$0xf]
    %v478 = vld [vmem:[%s15 + $0x4] sm:$0xf]
    %v479 = vld [vmem:[%s15 + $0x8] sm:$0xf]
    %v480 = vld [vmem:[%s15 + $0xc] sm:$0xf]
    %v481 = vld [vmem:[%s15 + $0x10] sm:$0xf]
    %v482 = vld [vmem:[%s15 + $0x14] sm:$0xf]
    %v483 = vld [vmem:[%s15 + $0x18] sm:$0xf]
    %v484 = vld [vmem:[%s15 + $0x1c] sm:$0xf]
    %v485 = vld [vmem:[%s16] sm:$0x1]
    %v490 = vunpack.c.l.b16 %v470
    %v491 = vunpack.c.l.b16 %v471
    %v492 = vunpack.c.l.b16 %v472
    %v493 = vunpack.c.l.b16 %v473
    %v494 = vpack.c.b16 %v491, %v490
    %v495 = vpack.c.b16 %v493, %v492
    %498 = vmatpush.bf16.msra.mxu0 0
    %499 = vmatpush.bf16.msra.mxu0 0
    %500 = vmatpush.bf16.msra.mxu0 0
    %501 = vmatpush.bf16.msra.mxu0 0
    %502 = vmatpush.bf16.msra.mxu0 0
    %503 = vmatpush.bf16.msra.mxu0 0
    %504 = vmatpush.bf16.msra.mxu0 %v495
    %505 = vmatpush.bf16.msra.mxu0 %v494
    %506 = vmatmul.bf16.gmra.mxu0 %v377
    %v507 = vpop.f32.mrf.mxu0
    %v508 = vadd.f32 0.0, %v507
    %v509 = vpop.f32.mrf.mxu0
    %v510 = vadd.f32 0.0, %v509
    %511 = vdwg.mxu0
    %v512 = vpack.c.bf16 %v510, %v508
    %v513 = vpack.c.bf16 %v468, %v467
    %v514 = vpack.c.bf16 %v469, %v469
    %v517 = vunpack.c.l.b16 %v474
    %v518 = vunpack.c.l.b16 %v475
    %v519 = vpack.c.b16 %v518, %v517
    %v522 = vsel %vm133, %v513, 0
    %v525 = vsel %vm133, %v514, 0
    %527 = vmatpush.bf16.msra.mxu0 0
    %528 = vmatpush.bf16.msra.mxu0 0
    %529 = vmatpush.bf16.msra.mxu0 0
    %530 = vmatpush.bf16.msra.mxu0 0
    %531 = vmatpush.bf16.msra.mxu0 0
    %532 = vmatpush.bf16.msra.mxu0 0
    %533 = vmatpush.bf16.msra.mxu0 0
    %534 = vmatpush.bf16.msra.mxu0 %v519
    %535 = vmatmul.bf16.gmra.mxu0 %v522
    %v536 = vpop.f32.mrf.mxu0
    %v537 = vadd.f32 0.0, %v536
    %v538 = vpop.f32.mrf.mxu0
    %v539 = vadd.f32 0.0, %v538
    %540 = vmatmul.bf16.gmra.mxu0 %v525
    %v541 = vpop.f32.mrf.mxu0
    %v542 = vadd.f32 0.0, %v541
    %v543 = vpop.f32.mrf.mxu0
    %544 = vdwg.mxu0
    %v546 = vsel %vm206, %v512, 0
    %548 = vmatpush.bf16.msra.mxu0 0
    %549 = vmatpush.bf16.msra.mxu0 0
    %550 = vmatpush.bf16.msra.mxu0 0
    %551 = vmatpush.bf16.msra.mxu0 0
    %552 = vmatpush.bf16.msra.mxu0 0
    %553 = vmatpush.bf16.msra.mxu0 0
    %554 = vmatpush.bf16.msra.mxu0 0
    %555 = vmatpush.bf16.msra.mxu0 %v546
    %556 = vmatmul.bf16.gmra.mxu0 %v201
    %v557 = vpop.f32.mrf.mxu0
    %v558 = vadd.f32 %v537, %v557
    %v559 = vpop.f32.mrf.mxu0
    %v560 = vadd.f32 %v539, %v559
    %561 = vmatmul.bf16.gmra.mxu0 %v204
    %v562 = vpop.f32.mrf.mxu0
    %v563 = vadd.f32 %v542, %v562
    %v564 = vpop.f32.mrf.mxu0
    %565 = vdwg.mxu0
    %v567 = vperm.slane %v476, 0
    %v569 = vadd.f32 %v558, %v567
    %v570 = vadd.f32 %v560, %v567
    %v571 = vadd.f32 %v563, %v567
    %v572 = vmax.f32 %v569, 0.0
    %v573 = vmax.f32 %v570, 0.0
    %v574 = vmax.f32 %v571, 0.0
    %v575 = vpack.c.bf16 %v573, %v572
    %v576 = vpack.c.bf16 %v574, %v574
    %v578 = vsel %vm161, %v576, 0
    %580 = vmatpush.bf16.msra.mxu0 0
    %581 = vmatpush.bf16.msra.mxu0 0
    %582 = vmatpush.bf16.msra.mxu0 0
    %583 = vmatpush.bf16.msra.mxu0 0
    %584 = vmatpush.bf16.msra.mxu0 0
    %585 = vmatpush.bf16.msra.mxu0 0
    %586 = vmatpush.bf16.msra.mxu0 %v578
    %587 = vmatpush.bf16.msra.mxu0 %v575
    %588 = vmatmul.bf16.gmra.mxu0 %v241
    %v589 = vpop.f32.mrf.mxu0
    %v590 = vadd.f32 0.0, %v589
    %v591 = vpop.f32.mrf.mxu0
    %v592 = vadd.f32 0.0, %v591
    %593 = vdwg.mxu0
    %v594 = vmul.f32 %v590, %v263
    %v595 = vmul.f32 %v592, %v268
    %598 = vrot.lane.b32.xlu0 %v356, 32
    %v599 = vpop.permute.xlu0 %598
    %600 = vrot.lane.b32.xlu0 %v357, 32
    %v601 = vpop.permute.xlu0 %600
    %v604 = vsel %vm280, %v594, %v599
    %v605 = vsel %vm280, %v595, %v601
    %v606 = vpack.c.bf16 %v605, %v604
    %v608 = vperm.slane %v485, 0
    %v618 = vunpack.c.l.b16 %v477
    %v619 = vunpack.c.l.b16 %v478
    %v620 = vunpack.c.l.b16 %v479
    %v621 = vunpack.c.l.b16 %v480
    %v622 = vunpack.c.l.b16 %v481
    %v623 = vunpack.c.l.b16 %v482
    %v624 = vunpack.c.l.b16 %v483
    %v625 = vunpack.c.l.b16 %v484
    %v626 = vpack.c.b16 %v619, %v618
    %v627 = vpack.c.b16 %v621, %v620
    %v628 = vpack.c.b16 %v623, %v622
    %v629 = vpack.c.b16 %v625, %v624
    %vm634 = vcmask 523264
    %v636 = vsel %vm634, %v606, 0
    %638 = vmatpush.bf16.msra.mxu0 0
    %639 = vmatpush.bf16.msra.mxu0 0
    %640 = vmatpush.bf16.msra.mxu0 0
    %641 = vmatpush.bf16.msra.mxu0 0
    %642 = vmatpush.bf16.msra.mxu0 %v629
    %643 = vmatpush.bf16.msra.mxu0 %v628
    %644 = vmatpush.bf16.msra.mxu0 %v627
    %645 = vmatpush.bf16.msra.mxu0 %v626
    %646 = vmatmul.bf16.gmra.mxu0 %v636
    %v647 = vpop.f32.mrf.mxu0
    %v648 = vadd.f32 %v608, %v647
    %v649 = vpop.f32.mrf.mxu0
    %v650 = vadd.f32 %v608, %v649
    %651 = vdwg.mxu0
    %v652 = vmax.f32 %v648, 0.0
    %v653 = vmax.f32 %v650, 0.0
    %v654 = vmul.f32 %v652, %v652
    %v655 = vmul.f32 %v653, %v653
    %v656 = vsel %vm280, %v654, 0.0
    %657 = vadd.xlane.f32.xlu0 %v656
    %v658 = vpop.xlane.xlu0 %657
    %v659 = vsel %vm330, %v655, 0.0
    %660 = vadd.xlane.f32.xlu0 %v659
    %v661 = vpop.xlane.xlu0 %660
    %v662 = vmax.f32 %v658, 1e-24
    %v663 = vmax.f32 %v661, 1e-24
    %v664 = vrsqrt.pop %v662
    %v665 = vmul.f32 %v664, %v662
    %v666 = vmul.f32 %v665, %v664
    %v667 = vmul.f32 0.5, %v666
    %v668 = vsub.f32 1.5, %v667
    %v669 = vmul.f32 %v664, %v668
    %vm670 = vweird.f32 %v662
    %vm671 = vweird.f32 %v664
    %vm672 = vmor %vm670, %vm671
    %v673 = vsel %vm672, %v664, %v669
    %v674 = vrsqrt.pop %v663
    %v675 = vmul.f32 %v674, %v663
    %v676 = vmul.f32 %v675, %v674
    %v677 = vmul.f32 0.5, %v676
    %v678 = vsub.f32 1.5, %v677
    %v679 = vmul.f32 %v674, %v678
    %vm680 = vweird.f32 %v663
    %vm681 = vweird.f32 %v674
    %vm682 = vmor %vm680, %vm681
    %v683 = vsel %vm682, %v674, %v679
    %v684 = vmul.f32 %v652, %v673
    %v685 = vmul.f32 %v653, %v683
    %v686 = vld [vmem:[%s17] sm:$0xf]
    %v687 = vld [vmem:[%s17 + $0x4] sm:$0xf]
    %v688 = vld [vmem:[%s17 + $0x8] sm:$0xf]
    %v689 = vld [vmem:[%s17 + $0xc] sm:$0xf]
    %v690 = vld [vmem:[%s18] sm:$0x1]
    %v691 = vpack.c.bf16 %v685, %v684
    %v696 = vunpack.c.l.b16 %v686
    %v697 = vunpack.c.l.b16 %v687
    %v698 = vunpack.c.l.b16 %v688
    %v699 = vunpack.c.l.b16 %v689
    %v700 = vpack.c.b16 %v697, %v696
    %v701 = vpack.c.b16 %v699, %v698
    %v705 = vsel %vm280, %v691, 0
    %707 = vmatpush.bf16.msra.mxu0 0
    %708 = vmatpush.bf16.msra.mxu0 0
    %709 = vmatpush.bf16.msra.mxu0 0
    %710 = vmatpush.bf16.msra.mxu0 0
    %711 = vmatpush.bf16.msra.mxu0 0
    %712 = vmatpush.bf16.msra.mxu0 0
    %713 = vmatpush.bf16.msra.mxu0 %v701
    %714 = vmatpush.bf16.msra.mxu0 %v700
    %715 = vmatmul.bf16.gmra.mxu0 %v705
    %v716 = vpop.f32.mrf.mxu0
    %v717 = vadd.f32 0.0, %v716
    %v718 = vpop.f32.mrf.mxu0
    %v719 = vadd.f32 0.0, %v718
    %720 = vdwg.mxu0
    %v721 = vpack.c.bf16 %v719, %v717
    %723 = vrot.lane.b32.xlu0 %v721, 112
    %v724 = vpop.permute.xlu0 %723
    %v726 = vsel %vm206, %v724, 0
    %728 = vmatpush.bf16.msra.mxu0 0
    %729 = vmatpush.bf16.msra.mxu0 0
    %730 = vmatpush.bf16.msra.mxu0 0
    %731 = vmatpush.bf16.msra.mxu0 0
    %732 = vmatpush.bf16.msra.mxu0 0
    %733 = vmatpush.bf16.msra.mxu0 0
    %734 = vmatpush.bf16.msra.mxu0 0
    %735 = vmatpush.bf16.msra.mxu0 %v726
    %736 = vmatmul.bf16.gmra.mxu0 %v414
    %v737 = vpop.f32.mrf.mxu0
    %v738 = vadd.f32 0.0, %v737
    %v739 = vpop.f32.mrf.mxu0
    %v740 = vadd.f32 0.0, %v739
    %741 = vmatmul.bf16.gmra.mxu0 %v417
    %v742 = vpop.f32.mrf.mxu0
    %v743 = vadd.f32 0.0, %v742
    %v744 = vpop.f32.mrf.mxu0
    %745 = vdwg.mxu0
    %v747 = vsel %vm206, %v721, 0
    %749 = vmatpush.bf16.msra.mxu0 0
    %750 = vmatpush.bf16.msra.mxu0 0
    %751 = vmatpush.bf16.msra.mxu0 0
    %752 = vmatpush.bf16.msra.mxu0 0
    %753 = vmatpush.bf16.msra.mxu0 0
    %754 = vmatpush.bf16.msra.mxu0 0
    %755 = vmatpush.bf16.msra.mxu0 0
    %756 = vmatpush.bf16.msra.mxu0 %v747
    %757 = vmatmul.bf16.gmra.mxu0 %v201
    %v758 = vpop.f32.mrf.mxu0
    %v759 = vadd.f32 %v738, %v758
    %v760 = vpop.f32.mrf.mxu0
    %v761 = vadd.f32 %v740, %v760
    %762 = vmatmul.bf16.gmra.mxu0 %v204
    %v763 = vpop.f32.mrf.mxu0
    %v764 = vadd.f32 %v743, %v763
    %v765 = vpop.f32.mrf.mxu0
    %766 = vdwg.mxu0
    %v768 = vperm.slane %v690, 0
    %v770 = vadd.f32 %v759, %v768
    %v771 = vadd.f32 %v761, %v768
    %v772 = vadd.f32 %v764, %v768
    %v773 = vmax.f32 %v770, 0.0
    %v774 = vmax.f32 %v771, 0.0
    %v775 = vmax.f32 %v772, 0.0
    %v776 = vld [vmem:[%s19] sm:$0xf]
    %v777 = vld [vmem:[%s19 + $0x4] sm:$0xf]
    %v778 = vld [vmem:[%s19 + $0x8] sm:$0xf]
    %v779 = vld [vmem:[%s19 + $0xc] sm:$0xf]
    %v780 = vld [vmem:[%s20] sm:$0xf]
    %v781 = vld [vmem:[%s20 + $0x4] sm:$0xf]
    %v782 = vld [vmem:[%s21] sm:$0x1]
    %v783 = vld [vmem:[%s22] sm:$0xf]
    %v784 = vld [vmem:[%s22 + $0x4] sm:$0xf]
    %v785 = vld [vmem:[%s22 + $0x8] sm:$0xf]
    %v786 = vld [vmem:[%s22 + $0xc] sm:$0xf]
    %v787 = vld [vmem:[%s22 + $0x10] sm:$0xf]
    %v788 = vld [vmem:[%s22 + $0x14] sm:$0xf]
    %v789 = vld [vmem:[%s23] sm:$0x1]
    %v794 = vunpack.c.l.b16 %v776
    %v795 = vunpack.c.l.b16 %v777
    %v796 = vunpack.c.l.b16 %v778
    %v797 = vunpack.c.l.b16 %v779
    %v798 = vpack.c.b16 %v795, %v794
    %v799 = vpack.c.b16 %v797, %v796
    %802 = vmatpush.bf16.msra.mxu0 0
    %803 = vmatpush.bf16.msra.mxu0 0
    %804 = vmatpush.bf16.msra.mxu0 0
    %805 = vmatpush.bf16.msra.mxu0 0
    %806 = vmatpush.bf16.msra.mxu0 0
    %807 = vmatpush.bf16.msra.mxu0 0
    %808 = vmatpush.bf16.msra.mxu0 %v799
    %809 = vmatpush.bf16.msra.mxu0 %v798
    %810 = vmatmul.bf16.gmra.mxu0 %v705
    %v811 = vpop.f32.mrf.mxu0
    %v812 = vadd.f32 0.0, %v811
    %v813 = vpop.f32.mrf.mxu0
    %v814 = vadd.f32 0.0, %v813
    %815 = vdwg.mxu0
    %v816 = vpack.c.bf16 %v814, %v812
    %v817 = vpack.c.bf16 %v774, %v773
    %v818 = vpack.c.bf16 %v775, %v775
    %v821 = vunpack.c.l.b16 %v780
    %v822 = vunpack.c.l.b16 %v781
    %v823 = vpack.c.b16 %v822, %v821
    %v826 = vsel %vm133, %v817, 0
    %v829 = vsel %vm133, %v818, 0
    %831 = vmatpush.bf16.msra.mxu0 0
    %832 = vmatpush.bf16.msra.mxu0 0
    %833 = vmatpush.bf16.msra.mxu0 0
    %834 = vmatpush.bf16.msra.mxu0 0
    %835 = vmatpush.bf16.msra.mxu0 0
    %836 = vmatpush.bf16.msra.mxu0 0
    %837 = vmatpush.bf16.msra.mxu0 0
    %838 = vmatpush.bf16.msra.mxu0 %v823
    %839 = vmatmul.bf16.gmra.mxu0 %v826
    %v840 = vpop.f32.mrf.mxu0
    %v841 = vadd.f32 0.0, %v840
    %v842 = vpop.f32.mrf.mxu0
    %v843 = vadd.f32 0.0, %v842
    %844 = vmatmul.bf16.gmra.mxu0 %v829
    %v845 = vpop.f32.mrf.mxu0
    %v846 = vadd.f32 0.0, %v845
    %v847 = vpop.f32.mrf.mxu0
    %848 = vdwg.mxu0
    %v850 = vsel %vm206, %v816, 0
    %852 = vmatpush.bf16.msra.mxu0 0
    %853 = vmatpush.bf16.msra.mxu0 0
    %854 = vmatpush.bf16.msra.mxu0 0
    %855 = vmatpush.bf16.msra.mxu0 0
    %856 = vmatpush.bf16.msra.mxu0 0
    %857 = vmatpush.bf16.msra.mxu0 0
    %858 = vmatpush.bf16.msra.mxu0 0
    %859 = vmatpush.bf16.msra.mxu0 %v850
    %860 = vmatmul.bf16.gmra.mxu0 %v201
    %v861 = vpop.f32.mrf.mxu0
    %v862 = vadd.f32 %v841, %v861
    %v863 = vpop.f32.mrf.mxu0
    %v864 = vadd.f32 %v843, %v863
    %865 = vmatmul.bf16.gmra.mxu0 %v204
    %v866 = vpop.f32.mrf.mxu0
    %v867 = vadd.f32 %v846, %v866
    %v868 = vpop.f32.mrf.mxu0
    %869 = vdwg.mxu0
    %v871 = vperm.slane %v782, 0
    %v873 = vadd.f32 %v862, %v871
    %v874 = vadd.f32 %v864, %v871
    %v875 = vadd.f32 %v867, %v871
    %v876 = vmax.f32 %v873, 0.0
    %v877 = vmax.f32 %v874, 0.0
    %v878 = vmax.f32 %v875, 0.0
    %v879 = vpack.c.bf16 %v877, %v876
    %v880 = vpack.c.bf16 %v878, %v878
    %v882 = vsel %vm161, %v880, 0
    %884 = vmatpush.bf16.msra.mxu0 0
    %885 = vmatpush.bf16.msra.mxu0 0
    %886 = vmatpush.bf16.msra.mxu0 0
    %887 = vmatpush.bf16.msra.mxu0 0
    %888 = vmatpush.bf16.msra.mxu0 0
    %889 = vmatpush.bf16.msra.mxu0 0
    %890 = vmatpush.bf16.msra.mxu0 %v882
    %891 = vmatpush.bf16.msra.mxu0 %v879
    %892 = vmatmul.bf16.gmra.mxu0 %v241
    %v893 = vpop.f32.mrf.mxu0
    %v894 = vadd.f32 0.0, %v893
    %v895 = vpop.f32.mrf.mxu0
    %v896 = vadd.f32 0.0, %v895
    %897 = vdwg.mxu0
    %v898 = vmul.f32 %v894, %v263
    %v899 = vmul.f32 %v896, %v268
    %902 = vrot.lane.b32.xlu0 %v684, 16
    %v903 = vpop.permute.xlu0 %902
    %904 = vrot.lane.b32.xlu0 %v685, 16
    %v905 = vpop.permute.xlu0 %904
    %v908 = vsel %vm133, %v898, %v903
    %v909 = vsel %vm133, %v899, %v905
    %v910 = vpack.c.bf16 %v909, %v908
    %v912 = vperm.slane %v789, 0
    %v920 = vunpack.c.l.b16 %v783
    %v921 = vunpack.c.l.b16 %v784
    %v922 = vunpack.c.l.b16 %v785
    %v923 = vunpack.c.l.b16 %v786
    %v924 = vunpack.c.l.b16 %v787
    %v925 = vunpack.c.l.b16 %v788
    %v926 = vpack.c.b16 %v921, %v920
    %v927 = vpack.c.b16 %v923, %v922
    %v928 = vpack.c.b16 %v925, %v924
    %v933 = vsel %vm305, %v910, 0
    %935 = vmatpush.bf16.msra.mxu0 0
    %936 = vmatpush.bf16.msra.mxu0 0
    %937 = vmatpush.bf16.msra.mxu0 0
    %938 = vmatpush.bf16.msra.mxu0 0
    %939 = vmatpush.bf16.msra.mxu0 0
    %940 = vmatpush.bf16.msra.mxu0 %v928
    %941 = vmatpush.bf16.msra.mxu0 %v927
    %942 = vmatpush.bf16.msra.mxu0 %v926
    %943 = vmatmul.bf16.gmra.mxu0 %v933
    %v944 = vpop.f32.mrf.mxu0
    %v945 = vadd.f32 %v912, %v944
    %v946 = vpop.f32.mrf.mxu0
    %v947 = vadd.f32 %v912, %v946
    %948 = vdwg.mxu0
    %v949 = vmax.f32 %v945, 0.0
    %v950 = vmax.f32 %v947, 0.0
    %v951 = vmul.f32 %v949, %v949
    %v952 = vmul.f32 %v950, %v950
    %v953 = vsel %vm133, %v951, 0.0
    %954 = vadd.xlane.f32.xlu0 %v953
    %v955 = vpop.xlane.xlu0 %954
    %vm956 = vcmask 125952
    %v957 = vsel %vm956, %v952, 0.0
    %958 = vadd.xlane.f32.xlu0 %v957
    %v959 = vpop.xlane.xlu0 %958
    %v960 = vmax.f32 %v955, 1e-24
    %v961 = vmax.f32 %v959, 1e-24
    %v962 = vrsqrt.pop %v960
    %v963 = vmul.f32 %v962, %v960
    %v964 = vmul.f32 %v963, %v962
    %v965 = vmul.f32 0.5, %v964
    %v966 = vsub.f32 1.5, %v965
    %v967 = vmul.f32 %v962, %v966
    %vm968 = vweird.f32 %v960
    %vm969 = vweird.f32 %v962
    %vm970 = vmor %vm968, %vm969
    %v971 = vsel %vm970, %v962, %v967
    %v972 = vrsqrt.pop %v961
    %v973 = vmul.f32 %v972, %v961
    %v974 = vmul.f32 %v973, %v972
    %v975 = vmul.f32 0.5, %v974
    %v976 = vsub.f32 1.5, %v975
    %v977 = vmul.f32 %v972, %v976
    %vm978 = vweird.f32 %v961
    %vm979 = vweird.f32 %v972
    %vm980 = vmor %vm978, %vm979
    %v981 = vsel %vm980, %v972, %v977
    %v982 = vmul.f32 %v949, %v971
    %v983 = vmul.f32 %v950, %v981
    %v984 = vld [vmem:[%s24] sm:$0xf]
    %v985 = vld [vmem:[%s24 + $0x4] sm:$0xf]
    %v986 = vld [vmem:[%s25] sm:$0x1]
    %v987 = vld [vmem:[%s26] sm:$0xf]
    %v988 = vld [vmem:[%s26 + $0x4] sm:$0xf]
    %v989 = vld [vmem:[%s26 + $0x8] sm:$0xf]
    %v990 = vld [vmem:[%s26 + $0xc] sm:$0xf]
    %v991 = vld [vmem:[%s27] sm:$0x1]
    %v992 = vpack.c.bf16 %v983, %v982
    %v994 = vperm.slane %v986, 0
    %v998 = vunpack.c.l.b16 %v984
    %v999 = vunpack.c.l.b16 %v985
    %v1000 = vpack.c.b16 %v999, %v998
    %v1003 = vsel %vm133, %v992, 0
    %1005 = vmatpush.bf16.msra.mxu0 0
    %1006 = vmatpush.bf16.msra.mxu0 0
    %1007 = vmatpush.bf16.msra.mxu0 0
    %1008 = vmatpush.bf16.msra.mxu0 0
    %1009 = vmatpush.bf16.msra.mxu0 0
    %1010 = vmatpush.bf16.msra.mxu0 0
    %1011 = vmatpush.bf16.msra.mxu0 0
    %1012 = vmatpush.bf16.msra.mxu0 %v1000
    %1013 = vmatmul.bf16.gmra.mxu0 %v1003
    %v1014 = vpop.f32.mrf.mxu0
    %v1015 = vadd.f32 %v994, %v1014
    %v1016 = vpop.f32.mrf.mxu0
    %v1017 = vadd.f32 %v994, %v1016
    %1018 = vdwg.mxu0
    %v1019 = vmax.f32 %v1015, 0.0
    %v1020 = vmax.f32 %v1017, 0.0
    %v1021 = vpack.c.bf16 %v1020, %v1019
    %v1023 = vperm.slane %v991, 0
    %v1029 = vunpack.c.l.b16 %v987
    %v1030 = vunpack.c.l.b16 %v988
    %v1031 = vunpack.c.l.b16 %v989
    %v1032 = vunpack.c.l.b16 %v990
    %v1033 = vpack.c.b16 %v1030, %v1029
    %v1034 = vpack.c.b16 %v1032, %v1031
    %v1038 = vsel %vm280, %v1021, 0
    %1040 = vmatpush.bf16.msra.mxu0 0
    %1041 = vmatpush.bf16.msra.mxu0 0
    %1042 = vmatpush.bf16.msra.mxu0 0
    %1043 = vmatpush.bf16.msra.mxu0 0
    %1044 = vmatpush.bf16.msra.mxu0 0
    %1045 = vmatpush.bf16.msra.mxu0 0
    %1046 = vmatpush.bf16.msra.mxu0 %v1034
    %1047 = vmatpush.bf16.msra.mxu0 %v1033
    %1048 = vmatmul.bf16.gmra.mxu0 %v1038
    %v1049 = vpop.f32.mrf.mxu0
    %v1050 = vadd.f32 %v1023, %v1049
    %v1051 = vpop.f32.mrf.mxu0
    %v1052 = vadd.f32 %v1023, %v1051
    %1053 = vdwg.mxu0
    %1054 = vst [vmem:[#allocation2] sm:$0xff] %v1050
    %1055 = vst [vmem:[#allocation2 + $0x8] sm:$0xf] %v1052
    // Predicated region
    $region114: #{gnn_forward.1} parent=1 // pred_check
      _
    $region115: #{gnn_forward.1} parent=1 // pred_check_branch
      %1057 = sbr.rel (0) target = $region117
    $region116: #{gnn_forward.1} parent=1 // pred_region
      %1059 = vsyncadd [#allocation3], 0
      %s1060 = sshll.u32 [#allocation2], 4
      %s1061 = int_to_ptr.vmem [resolvable:$true] %s1060
      %s1062 = sshll.u32 %s28, 4
      %s1063 = int_to_ptr.hbm [resolvable:$true] %s1062
      %1068 = dma.vmem_to_hbm [thread:$0]  %s1061, 256, %s1063, [#allocation3], 128, 128, 8
    $region117: #{gnn_forward.1} parent=1 // pred_fallthru
      _
    // Predicated region
    $region118: #{gnn_forward.1} parent=1 // pred_check
      _
    $region119: #{gnn_forward.1} parent=1 // pred_check_branch
      %1070 = sbr.rel (0) target = $region121
    $region120: #{gnn_forward.1} parent=1 // pred_region
      %1072 = dma.done [#allocation3], 256
    $region121: #{gnn_forward.1} parent=1 // pred_fallthru
      _
    %1073 = vsyncpa [#allocation3], 1

</llo_original>
